<compile_context>
chip_gen: v7x
topology: tpu7x:2x2x1
jax: 0.10.0
libtpu: 0.0.40
codegen_flags: <defaults>
</compile_context>

<pallas_src>
import functools

import jax
import jax.numpy as jnp
import numpy as np
from jax.experimental import pallas as pl
from jax.experimental.pallas import tpu as pltpu


def _pool_kernel(x_ref, p_ref, o_ref, acc_ref, *, inv_count):
    # x_ref: (TB, TK)   flattened-image slab (lane-dense along H*W)
    # p_ref: (TK, OHW)  0/1 window-membership slab
    # o_ref: (TB, OHW)
    # acc_ref: (TB, OHW) f32 accumulator, resident across the K (H*W) axis.
    k = pl.program_id(1)

    @pl.when(k == 0)
    def _():
        acc_ref[...] = jnp.zeros_like(acc_ref)

    acc_ref[...] += jnp.dot(
        x_ref[...], p_ref[...], preferred_element_type=jnp.float32
    )

    @pl.when(k == pl.num_programs(1) - 1)
    def _():
        # Apply the averaging scale once, in f32, before the output cast.
        o_ref[...] = (acc_ref[...] * inv_count).astype(o_ref.dtype)


def _choose_k_tile(HW, OHW, itemsize, p_tile_budget):
    """Tile the contraction (H*W) axis when the whole P matrix is too big."""
    p_bytes = HW * OHW * itemsize
    if p_bytes <= p_tile_budget or HW % 128 != 0:
        # Small P (or HW not 128-aligned): keep the single-matmul form.
        return HW
    n128 = HW // 128
    best = 128  # smallest legal lane-aligned K tile
    for m in range(1, n128 + 1):
        if n128 % m == 0 and 128 * m * OHW * itemsize <= p_tile_budget:
            best = 128 * m
    return best


def _choose_batch_tile(B, row_bytes, itemsize, budget_bytes, min_steps):
    """Pick rows-per-grid-step (TB) and the (possibly padded) batch extent."""
    # Sublane packing: f32 -> 8 rows/vreg, bf16 -> 16, int8/fp8 -> 32.
    align = max(8, 32 // max(1, itemsize))
    cap = max(align, budget_bytes // max(1, row_bytes))
    cap = max(align, (cap // align) * align)
    if min_steps > 1:
        # Leave work for every TensorCore (v7x has 2): force >= min_steps
        # grid steps whenever B is big enough to split.
        split = (pl.cdiv(B, min_steps) // align) * align
        if split >= align:
            cap = min(cap, split)
    if B <= cap:
        return B, B  # single step, full-dim block (no (8,128) constraint)
    # Prefer a tile that divides B so we never pad/copy the input in HBM.
    d = (cap // align) * align
    while d >= align:
        if B % d == 0:
            return d, B
        d -= align
    # Rare fallback: B has no aligned divisor <= the cap -> pad the batch.
    bp = pl.cdiv(B, cap) * cap
    return cap, bp


def _pool_call(xb, p, out_dtype, *, TB, TK, inv_count, vmem_limit, single_buffer_p):
    Bp, HW = xb.shape
    _, OHW = p.shape
    num_b = Bp // TB
    num_k = HW // TK
    itemsize = jnp.dtype(xb.dtype).itemsize

    p_spec_kwargs = {}
    if single_buffer_p and num_k == 1:
        # P's block index never changes: don't spend VMEM double-buffering it.
        p_spec_kwargs["pipeline_mode"] = pl.Buffered(1)

    cost = pl.CostEstimate(
        flops=2 * Bp * HW * OHW,
        transcendentals=0,
        bytes_accessed=(Bp * HW + Bp * OHW) * itemsize
        + (num_b if num_k > 1 else 1) * HW * OHW * itemsize,
    )

    return pl.pallas_call(
        functools.partial(_pool_kernel, inv_count=inv_count),
        out_shape=jax.ShapeDtypeStruct((Bp, OHW), out_dtype),
        grid=(num_b, num_k),
        in_specs=[
            pl.BlockSpec((TB, TK), lambda b, k: (b, k)),
            pl.BlockSpec((TK, OHW), lambda b, k: (k, 0), **p_spec_kwargs),
        ],
        out_specs=pl.BlockSpec((TB, OHW), lambda b, k: (b, 0)),
        scratch_shapes=[pltpu.VMEM((TB, OHW), jnp.float32)],
        compiler_params=pltpu.CompilerParams(
            dimension_semantics=("parallel", "arbitrary"),
            vmem_limit_bytes=vmem_limit,
        ),
        cost_estimate=cost,
    )(xb, p)


def fake_adaptive_avg_pool2d(x, output_size):
    """x: (N, C, H, W) array (NCHW, same as PyTorch)."""
    N, C, H, W = x.shape
    out_h, out_w = output_size
    stride_h = H // out_h
    stride_w = W // out_w
    kernel_h = H - (out_h - 1) * stride_h
    kernel_w = W - (out_w - 1) * stride_w
    inv_count = 1.0 / float(kernel_h * kernel_w)
    # NOTE: like the original "Fake" module, this assumes out <= in per dim.

    # 0/1 window-membership matrix, built statically (numpy).  Entries stay
    # exact in x.dtype; the 1/(kh*kw) scale is applied in f32 in-kernel.
    h_idx = np.arange(H)[None, :]
    oh_start = (np.arange(out_h) * stride_h)[:, None]
    ph = (h_idx >= oh_start) & (h_idx < oh_start + kernel_h)          # (OH, H)
    w_idx = np.arange(W)[None, :]
    ow_start = (np.arange(out_w) * stride_w)[:, None]
    pw = (w_idx >= ow_start) & (w_idx < ow_start + kernel_w)          # (OW, W)
    p = jnp.asarray(np.kron(ph, pw).astype(np.float32).T, dtype=x.dtype)  # (HW, OHW)

    B, HW, OHW = N * C, H * W, out_h * out_w
    itemsize = jnp.dtype(x.dtype).itemsize

    # Generation-aware VMEM budgets (v5e/v6e: 128 MiB physical; v7x: 64 MiB
    # physical / 32 MiB scoped and 2 TensorCores).  Conservative fallback if
    # the query is unavailable.
    try:
        vmem_cap = pltpu.get_tpu_info().vmem_capacity_bytes
    except Exception:
        vmem_cap = 64 * 1024 * 1024
    if vmem_cap >= 100 * 1024 * 1024:        # v5e / v6e class
        x_tile_budget = 10 * 1024 * 1024
        p_tile_budget = 2 * 1024 * 1024
        vmem_limit = 64 * 1024 * 1024
        min_steps = 1
    else:                                     # v7x class
        x_tile_budget = 4 * 1024 * 1024
        p_tile_budget = 1 * 1024 * 1024
        vmem_limit = 32 * 1024 * 1024
        min_steps = 2                         # feed both TensorCores

    TK = _choose_k_tile(HW, OHW, itemsize, p_tile_budget)
    TB, Bp = _choose_batch_tile(B, TK * itemsize, itemsize, x_tile_budget, min_steps)

    xb = x.reshape(B, HW)
    if Bp != B:
        # Rare fallback only (common path picks TB dividing B — no HBM copy).
        xb = jnp.pad(xb, ((0, Bp - B), (0, 0)))

    try:
        out = _pool_call(xb, p, x.dtype, TB=TB, TK=TK, inv_count=inv_count,
                         vmem_limit=vmem_limit, single_buffer_p=True)
    except Exception:
        # Fallback if this jax version rejects pl.Buffered(1) on an input
        # BlockSpec; the default double-buffered spec is always valid.
        out = _pool_call(xb, p, x.dtype, TB=TB, TK=TK, inv_count=inv_count,
                         vmem_limit=vmem_limit, single_buffer_p=False)

    if Bp != B:
        out = out[:B]
    return out.reshape(N, C, out_h, out_w)


def _reference_avg_pool(x_np, output_size):
    """Pure-numpy reference matching F.avg_pool2d with the computed kernel/stride."""
    N, C, H, W = x_np.shape
    out_h, out_w = output_size
    sh, sw = H // out_h, W // out_w
    kh, kw = H - (out_h - 1) * sh, W - (out_w - 1) * sw
    y = np.zeros((N, C, out_h, out_w), dtype=np.float32)
    for oh in range(out_h):
        for ow in range(out_w):
            win = x_np[:, :, oh * sh:oh * sh + kh, ow * sw:ow * sw + kw]
            y[:, :, oh, ow] = win.mean(axis=(2, 3))
    return y


if __name__ == "__main__":
    key = jax.random.PRNGKey(0)
    k1, k2 = jax.random.split(key)

    # Small case (single-matmul path, num_k == 1, P single-buffered).
    x1 = jax.random.normal(k1, (2, 4, 16, 16), dtype=jnp.float32)
    y1 = jax.block_until_ready(fake_adaptive_avg_pool2d(x1, (4, 4)))
    ref1 = _reference_avg_pool(np.asarray(x1), (4, 4))
    assert y1.shape == (2, 4, 4, 4)
    assert np.allclose(np.asarray(y1), ref1, atol=1e-5, rtol=1e-5)

    # Larger spatial case: exercises the K-tiled accumulator path (P > budget).
    x2 = jax.random.normal(k2, (2, 4, 64, 64), dtype=jnp.float32)
    y2 = jax.block_until_ready(fake_adaptive_avg_pool2d(x2, (16, 16)))
    ref2 = _reference_avg_pool(np.asarray(x2), (16, 16))
    assert y2.shape == (2, 4, 16, 16)
    assert np.allclose(np.asarray(y2), ref2, atol=1e-5, rtol=1e-5)

    print("KERNEL_OK")
</pallas_src>

<mosaic_0001>
module attributes {stable_mosaic.version = 11 : i64} {
  func.func @_pool_kernel(%arg0: i32, %arg1: i32, %arg2: memref<8x256xf32, #tpu.memory_space<vmem>>, %arg3: memref<256x16xf32, #tpu.memory_space<vmem>>, %arg4: memref<8x16xf32, #tpu.memory_space<vmem>>, %arg5: memref<8x16xf32, #tpu.memory_space<vmem>>) attributes {dimension_semantics = [#tpu.dimension_semantics<parallel>, #tpu.dimension_semantics<arbitrary>], iteration_bounds = array<i64: 1, 1>, scalar_prefetch = 0 : i64, scratch_operands = 1 : i64, tpu.core_type = #tpu.core_type<tc>, window_params = [{transform_indices = @transform_0, window_bounds = array<i64: 8, 256>}, {pipeline_mode = #tpu.pipeline_mode<synchronous>, transform_indices = @transform_1, window_bounds = array<i64: 256, 16>}, {transform_indices = @transform_2, window_bounds = array<i64: 8, 16>}]} {
    %c0_i32 = arith.constant 0 : i32
    %0 = arith.cmpi eq, %arg1, %c0_i32 : i32
    %1 = arith.extui %0 : i1 to i32
    %c0_i32_0 = arith.constant 0 : i32
    %2 = arith.cmpi ne, %1, %c0_i32_0 : i32
    scf.if %2 {
      %cst_10 = arith.constant 0.000000e+00 : f32
      %12 = vector.broadcast %cst_10 : f32 to vector<8x16xf32>
      %c0_11 = arith.constant 0 : index
      %c0_12 = arith.constant 0 : index
      %13 = vector.load %arg5[%c0_11, %c0_12] : memref<8x16xf32, #tpu.memory_space<vmem>>, vector<8x16xf32>
      tpu.vector_store %arg5[%c0_11, %c0_12], %12 {strides = array<i32>} : memref<8x16xf32, #tpu.memory_space<vmem>>, vector<8x16xf32>,
    } else {
    }
    %c0 = arith.constant 0 : index
    %c0_1 = arith.constant 0 : index
    %3 = vector.load %arg5[%c0, %c0_1] : memref<8x16xf32, #tpu.memory_space<vmem>>, vector<8x16xf32>
    %c0_2 = arith.constant 0 : index
    %c0_3 = arith.constant 0 : index
    %4 = vector.load %arg2[%c0_2, %c0_3] : memref<8x256xf32, #tpu.memory_space<vmem>>, vector<8x256xf32>
    %c0_4 = arith.constant 0 : index
    %c0_5 = arith.constant 0 : index
    %5 = vector.load %arg3[%c0_4, %c0_5] : memref<256x16xf32, #tpu.memory_space<vmem>>, vector<256x16xf32>
    %cst = arith.constant dense<0.000000e+00> : vector<8x16xf32>
    %6 = tpu.matmul %4, %5, %cst {dimension_numbers = #tpu.dot_dimension_numbers<[1], [0], [0], [1], [0, 0, 1, 1], [], []>} : vector<8x256xf32>, vector<256x16xf32>, vector<8x16xf32> -> vector<8x16xf32>
    %7 = arith.addf %3, %6 : vector<8x16xf32>
    %c0_6 = arith.constant 0 : index
    %c0_7 = arith.constant 0 : index
    %8 = vector.load %arg5[%c0_6, %c0_7] : memref<8x16xf32, #tpu.memory_space<vmem>>, vector<8x16xf32>
    tpu.vector_store %arg5[%c0_6, %c0_7], %7 {strides = array<i32>} : memref<8x16xf32, #tpu.memory_space<vmem>>, vector<8x16xf32>,
    %c0_i32_8 = arith.constant 0 : i32
    %9 = arith.cmpi eq, %arg1, %c0_i32_8 : i32
    %10 = arith.extui %9 : i1 to i32
    %c0_i32_9 = arith.constant 0 : i32
    %11 = arith.cmpi ne, %10, %c0_i32_9 : i32
    scf.if %11 {
      %c0_10 = arith.constant 0 : index
      %c0_11 = arith.constant 0 : index
      %12 = vector.load %arg5[%c0_10, %c0_11] : memref<8x16xf32, #tpu.memory_space<vmem>>, vector<8x16xf32>
      %cst_12 = arith.constant 6.250000e-02 : f32
      %13 = vector.broadcast %cst_12 : f32 to vector<8x16xf32>
      %14 = arith.mulf %12, %13 : vector<8x16xf32>
      %c0_13 = arith.constant 0 : index
      %c0_14 = arith.constant 0 : index
      %15 = vector.load %arg4[%c0_13, %c0_14] : memref<8x16xf32, #tpu.memory_space<vmem>>, vector<8x16xf32>
      tpu.vector_store %arg4[%c0_13, %c0_14], %14 {strides = array<i32>} : memref<8x16xf32, #tpu.memory_space<vmem>>, vector<8x16xf32>,
    } else {
    }
    return
  }
  func.func @transform_0(%arg0: i32, %arg1: i32) -> (i32, i32) {
    %c0_i32 = arith.constant 0 : i32
    return %arg0, %arg1 : i32, i32
  }
  func.func @transform_1(%arg0: i32, %arg1: i32) -> (i32, i32) {
    %c0_i32 = arith.constant 0 : i32
    %c0_i32_0 = arith.constant 0 : i32
    return %arg1, %c0_i32 : i32, i32
  }
  func.func @transform_2(%arg0: i32, %arg1: i32) -> (i32, i32) {
    %c0_i32 = arith.constant 0 : i32
    %c0_i32_0 = arith.constant 0 : i32
    return %arg0, %c0_i32 : i32, i32
  }
}

module attributes {stable_mosaic.version = 11 : i64} {
  func.func @_pool_kernel(%arg0: i32, %arg1: i32, %arg2: memref<8x256xf32, #tpu.memory_space<vmem>>, %arg3: memref<256x16xf32, #tpu.memory_space<vmem>>, %arg4: memref<8x16xf32, #tpu.memory_space<vmem>>, %arg5: memref<8x16xf32, #tpu.memory_space<vmem>>) attributes {dimension_semantics = [#tpu.dimension_semantics<parallel>, #tpu.dimension_semantics<arbitrary>], iteration_bounds = array<i64: 1, 1>, scalar_prefetch = 0 : i64, scratch_operands = 1 : i64, tpu.core_type = #tpu.core_type<tc>, window_params = [{transform_indices = @transform_0, window_bounds = array<i64: 8, 256>}, {transform_indices = @transform_1, window_bounds = array<i64: 256, 16>}, {transform_indices = @transform_2, window_bounds = array<i64: 8, 16>}]} {
    %c0_i32 = arith.constant 0 : i32
    %0 = arith.cmpi eq, %arg1, %c0_i32 : i32
    %1 = arith.extui %0 : i1 to i32
    %c0_i32_0 = arith.constant 0 : i32
    %2 = arith.cmpi ne, %1, %c0_i32_0 : i32
    scf.if %2 {
      %cst_10 = arith.constant 0.000000e+00 : f32
      %12 = vector.broadcast %cst_10 : f32 to vector<8x16xf32>
      %c0_11 = arith.constant 0 : index
      %c0_12 = arith.constant 0 : index
      %13 = vector.load %arg5[%c0_11, %c0_12] : memref<8x16xf32, #tpu.memory_space<vmem>>, vector<8x16xf32>
      tpu.vector_store %arg5[%c0_11, %c0_12], %12 {strides = array<i32>} : memref<8x16xf32, #tpu.memory_space<vmem>>, vector<8x16xf32>,
    } else {
    }
    %c0 = arith.constant 0 : index
    %c0_1 = arith.constant 0 : index
    %3 = vector.load %arg5[%c0, %c0_1] : memref<8x16xf32, #tpu.memory_space<vmem>>, vector<8x16xf32>
    %c0_2 = arith.constant 0 : index
    %c0_3 = arith.constant 0 : index
    %4 = vector.load %arg2[%c0_2, %c0_3] : memref<8x256xf32, #tpu.memory_space<vmem>>, vector<8x256xf32>
    %c0_4 = arith.constant 0 : index
    %c0_5 = arith.constant 0 : index
    %5 = vector.load %arg3[%c0_4, %c0_5] : memref<256x16xf32, #tpu.memory_space<vmem>>, vector<256x16xf32>
    %cst = arith.constant dense<0.000000e+00> : vector<8x16xf32>
    %6 = tpu.matmul %4, %5, %cst {dimension_numbers = #tpu.dot_dimension_numbers<[1], [0], [0], [1], [0, 0, 1, 1], [], []>} : vector<8x256xf32>, vector<256x16xf32>, vector<8x16xf32> -> vector<8x16xf32>
    %7 = arith.addf %3, %6 : vector<8x16xf32>
    %c0_6 = arith.constant 0 : index
    %c0_7 = arith.constant 0 : index
    %8 = vector.load %arg5[%c0_6, %c0_7] : memref<8x16xf32, #tpu.memory_space<vmem>>, vector<8x16xf32>
    tpu.vector_store %arg5[%c0_6, %c0_7], %7 {strides = array<i32>} : memref<8x16xf32, #tpu.memory_space<vmem>>, vector<8x16xf32>,
    %c0_i32_8 = arith.constant 0 : i32
    %9 = arith.cmpi eq, %arg1, %c0_i32_8 : i32
    %10 = arith.extui %9 : i1 to i32
    %c0_i32_9 = arith.constant 0 : i32
    %11 = arith.cmpi ne, %10, %c0_i32_9 : i32
    scf.if %11 {
      %c0_10 = arith.constant 0 : index
      %c0_11 = arith.constant 0 : index
      %12 = vector.load %arg5[%c0_10, %c0_11] : memref<8x16xf32, #tpu.memory_space<vmem>>, vector<8x16xf32>
      %cst_12 = arith.constant 6.250000e-02 : f32
      %13 = vector.broadcast %cst_12 : f32 to vector<8x16xf32>
      %14 = arith.mulf %12, %13 : vector<8x16xf32>
      %c0_13 = arith.constant 0 : index
      %c0_14 = arith.constant 0 : index
      %15 = vector.load %arg4[%c0_13, %c0_14] : memref<8x16xf32, #tpu.memory_space<vmem>>, vector<8x16xf32>
      tpu.vector_store %arg4[%c0_13, %c0_14], %14 {strides = array<i32>} : memref<8x16xf32, #tpu.memory_space<vmem>>, vector<8x16xf32>,
    } else {
    }
    return
  }
  func.func @transform_0(%arg0: i32, %arg1: i32) -> (i32, i32) {
    %c0_i32 = arith.constant 0 : i32
    return %arg0, %arg1 : i32, i32
  }
  func.func @transform_1(%arg0: i32, %arg1: i32) -> (i32, i32) {
    %c0_i32 = arith.constant 0 : i32
    %c0_i32_0 = arith.constant 0 : i32
    return %arg1, %c0_i32 : i32, i32
  }
  func.func @transform_2(%arg0: i32, %arg1: i32) -> (i32, i32) {
    %c0_i32 = arith.constant 0 : i32
    %c0_i32_0 = arith.constant 0 : i32
    return %arg0, %c0_i32 : i32, i32
  }
}

</mosaic_0001>

<llo_original>
// kernel: tpu_custom_call.1
$region0: #{tpu_custom_call.1}
  #allocation0 [shape = 'u32[]', space=smem, size = 0x4, offset = 0x4, fixed_abs, tag = 'smem constant byte address 0x4 - core index']
  #allocation1 [shape = 'u32[144,128]{1,0:T(1,128)}', space=vmem, size = 0x12000, scoped, tag = 'internal scratch']
  #allocation2 [shape = 'f32[8,16]{1,0:T(8,128)}', space=vmem, size = 0x1000, scoped, tag = 'scratch operand']
  %s0 = inlined_call_operand.vmem [shape: f32[8,256], index: 0, kind: input, shape index: {}]
  %s1 = inlined_call_operand.vmem [shape: f32[256,16], index: 1, kind: input, shape index: {}]
  %s2 = inlined_call_operand.hbm [shape: f32[8,16], index: 2, kind: output, shape index: {}]
  %s3 = sld [smem:[#allocation0]]
  $region26: #{tpu_custom_call.1} parent=0
    _
  %s5 = ssub.s32 1, %s3
  %s6 = scalar_select 0, %s5, %s3
  $region1: #{tpu_custom_call.1} parent=0
    #allocation3 [shape = 'u8[4096]{0}', space=vmem, size = 0x1000, scoped, tag = 'output window, operand 0, single buffered']
    #allocation4 [shape = 's32[1]{0}', space=sflag, size = 0x4, scoped, tag = 'scoped memory for tpu_custom_call.1']
    %7 = vsyncpa [#allocation4], 0
    // Predicated region
    $region2: #{tpu_custom_call.1} parent=1 // pred_check
      _
    $region3: #{tpu_custom_call.1} parent=1 // pred_check_branch
      %9 = sbr.rel (0) target = $region5
    $region4: #{tpu_custom_call.1} parent=1 // pred_region
      _
    $region5: #{tpu_custom_call.1} parent=1 // pred_fallthru
      _
    // Predicated region
    $region6: #{tpu_custom_call.1} parent=1 // pred_check
      _
    $region7: #{tpu_custom_call.1} parent=1 // pred_check_branch
      %11 = sbr.rel (0) target = $region9
    $region8: #{tpu_custom_call.1} parent=1 // pred_region
      _
    $region9: #{tpu_custom_call.1} parent=1 // pred_fallthru
      _
    %p12 = scmp.eq.s32.totalorder 0, 0
    // Predicated region
    $region10: #{tpu_custom_call.1} parent=1 // pred_check
      %p13 = pneg %p12
    $region11: #{tpu_custom_call.1} parent=1 // pred_check_branch
      %15 = sbr.rel (%p13) target = $region13
    $region12: #{tpu_custom_call.1} parent=1 // pred_region
      %vm16 = vcmask 130048
      %17 = vst.msk [vmem:[#allocation2] sm:$0xff] %vm16, 0.0
    $region13: #{tpu_custom_call.1} parent=1 // pred_fallthru
      _
    %v18 = vld [vmem:[#allocation2] sm:$0xff]
    %v19 = vld [vmem:[%s0] sm:$0xff]
    %v20 = vld [vmem:[%s0 + $0x8] sm:$0xff]
    %v21 = vld [vmem:[%s1] sm:$0xff]
    %v22 = vld [vmem:[%s1 + $0x8] sm:$0xff]
    %v23 = vld [vmem:[%s1 + $0x10] sm:$0xff]
    %v24 = vld [vmem:[%s1 + $0x18] sm:$0xff]
    %v25 = vld [vmem:[%s1 + $0x20] sm:$0xff]
    %v26 = vld [vmem:[%s1 + $0x28] sm:$0xff]
    %v27 = vld [vmem:[%s1 + $0x30] sm:$0xff]
    %v28 = vld [vmem:[%s1 + $0x38] sm:$0xff]
    %v29 = vld [vmem:[%s1 + $0x40] sm:$0xff]
    %v30 = vld [vmem:[%s1 + $0x48] sm:$0xff]
    %v31 = vld [vmem:[%s1 + $0x50] sm:$0xff]
    %v32 = vld [vmem:[%s1 + $0x58] sm:$0xff]
    %v33 = vld [vmem:[%s1 + $0x60] sm:$0xff]
    %v34 = vld [vmem:[%s1 + $0x68] sm:$0xff]
    %v35 = vld [vmem:[%s1 + $0x70] sm:$0xff]
    %v36 = vld [vmem:[%s1 + $0x78] sm:$0xff]
    %v37 = vld [vmem:[%s1 + $0x80] sm:$0xff]
    %v38 = vld [vmem:[%s1 + $0x88] sm:$0xff]
    %v39 = vld [vmem:[%s1 + $0x90] sm:$0xff]
    %v40 = vld [vmem:[%s1 + $0x98] sm:$0xff]
    %v41 = vld [vmem:[%s1 + $0xa0] sm:$0xff]
    %v42 = vld [vmem:[%s1 + $0xa8] sm:$0xff]
    %v43 = vld [vmem:[%s1 + $0xb0] sm:$0xff]
    %v44 = vld [vmem:[%s1 + $0xb8] sm:$0xff]
    %v45 = vld [vmem:[%s1 + $0xc0] sm:$0xff]
    %v46 = vld [vmem:[%s1 + $0xc8] sm:$0xff]
    %v47 = vld [vmem:[%s1 + $0xd0] sm:$0xff]
    %v48 = vld [vmem:[%s1 + $0xd8] sm:$0xff]
    %v49 = vld [vmem:[%s1 + $0xe0] sm:$0xff]
    %v50 = vld [vmem:[%s1 + $0xe8] sm:$0xff]
    %v51 = vld [vmem:[%s1 + $0xf0] sm:$0xff]
    %v52 = vld [vmem:[%s1 + $0xf8] sm:$0xff]
    %53 = vmatprep.subr.mxu0 0.0
    %54 = vmatpush1.msra.mxu0 %v21
    %55 = vmatprep.subr.mxu0 0.0
    %56 = vmatpush1.msra.mxu0 %v22
    %57 = vmatprep.subr.mxu0 0.0
    %58 = vmatpush1.msra.mxu0 %v23
    %59 = vmatprep.subr.mxu0 0.0
    %60 = vmatpush1.msra.mxu0 %v24
    %61 = vmatprep.subr.mxu0 0.0
    %62 = vmatpush1.msra.mxu0 %v25
    %63 = vmatprep.subr.mxu0 0.0
    %64 = vmatpush1.msra.mxu0 %v26
    %65 = vmatprep.subr.mxu0 0.0
    %66 = vmatpush1.msra.mxu0 %v27
    %67 = vmatprep.subr.mxu0 0.0
    %68 = vmatpush1.msra.mxu0 %v28
    %69 = vmatprep.subr.mxu0 0.0
    %70 = vmatpush1.msra.mxu0 %v29
    %71 = vmatprep.subr.mxu0 0.0
    %72 = vmatpush1.msra.mxu0 %v30
    %73 = vmatprep.subr.mxu0 0.0
    %74 = vmatpush1.msra.mxu0 %v31
    %75 = vmatprep.subr.mxu0 0.0
    %76 = vmatpush1.msra.mxu0 %v32
    %77 = vmatprep.subr.mxu0 0.0
    %78 = vmatpush1.msra.mxu0 %v33
    %79 = vmatprep.subr.mxu0 0.0
    %80 = vmatpush1.msra.mxu0 %v34
    %81 = vmatprep.subr.mxu0 0.0
    %82 = vmatpush1.msra.mxu0 %v35
    %83 = vmatprep.subr.mxu0 0.0
    %84 = vmatpush1.msra.mxu0 %v36
    %85 = vmatprep.subr.mxu0 0.0
    %86 = vmatpush1.msra.mxu0 %v37
    %87 = vmatprep.subr.mxu0 0.0
    %88 = vmatpush1.msra.mxu0 %v38
    %89 = vmatprep.subr.mxu0 0.0
    %90 = vmatpush1.msra.mxu0 %v39
    %91 = vmatprep.subr.mxu0 0.0
    %92 = vmatpush1.msra.mxu0 %v40
    %93 = vmatprep.subr.mxu0 0.0
    %94 = vmatpush1.msra.mxu0 %v41
    %95 = vmatprep.subr.mxu0 0.0
    %96 = vmatpush1.msra.mxu0 %v42
    %97 = vmatprep.subr.mxu0 0.0
    %98 = vmatpush1.msra.mxu0 %v43
    %99 = vmatprep.subr.mxu0 0.0
    %100 = vmatpush1.msra.mxu0 %v44
    %101 = vmatprep.subr.mxu0 0.0
    %102 = vmatpush1.msra.mxu0 %v45
    %103 = vmatprep.subr.mxu0 0.0
    %104 = vmatpush1.msra.mxu0 %v46
    %105 = vmatprep.subr.mxu0 0.0
    %106 = vmatpush1.msra.mxu0 %v47
    %107 = vmatprep.subr.mxu0 0.0
    %108 = vmatpush1.msra.mxu0 %v48
    %109 = vmatprep.subr.mxu0 0.0
    %110 = vmatpush1.msra.mxu0 %v49
    %111 = vmatprep.subr.mxu0 0.0
    %112 = vmatpush1.msra.mxu0 %v50
    %113 = vmatprep.subr.mxu0 0.0
    %114 = vmatpush1.msra.mxu0 %v51
    %115 = vmatprep.subr.mxu0 0.0
    %116 = vmatpush1.msra.mxu0 %v52
    %117 = vmatprep.mubr.f32.mxu0 %v20
    %118 = vmatmul.mubr.f32.gmra.mrb[0].mxu0 %v19
    %v119 = vpop.f32.mrb[0].mxu0
    %v120 = vadd.f32 0.0, %v119
    %v121 = vpop.f32.mrb[0].mxu0
    %122 = vdwg.mxu0
    %v123 = vadd.f32 %v18, %v120
    %vm124 = vcmask 130048
    %125 = vst.msk [vmem:[#allocation2] sm:$0xff] %vm124, %v123
    // Predicated region
    $region14: #{tpu_custom_call.1} parent=1 // pred_check
      %p126 = pneg %p12
    $region15: #{tpu_custom_call.1} parent=1 // pred_check_branch
      %128 = sbr.rel (%p126) target = $region17
    $region16: #{tpu_custom_call.1} parent=1 // pred_region
      %v129 = vld [vmem:[#allocation2] sm:$0xff]
      %v130 = vmul.f32 %v129, 0.0625
      %131 = vst.msk [vmem:[#allocation3] sm:$0xff] %vm124, %v130
    $region17: #{tpu_custom_call.1} parent=1 // pred_fallthru
      _
    // Predicated region
    $region18: #{tpu_custom_call.1} parent=1 // pred_check
      _
    $region19: #{tpu_custom_call.1} parent=1 // pred_check_branch
      %133 = sbr.rel (0) target = $region21
    $region20: #{tpu_custom_call.1} parent=1 // pred_region
      %s135 = ssub.s32 128, 128
      %136 = vsyncadd [#allocation4], %s135
      %s138 = sshll.u32 [#allocation3], 4
      %s139 = int_to_ptr.vmem [resolvable:$true] %s138
      %141 = dma.vmem_to_hbm [thread:$0]  %s139, 128, %s2, [#allocation4]
    $region21: #{tpu_custom_call.1} parent=1 // pred_fallthru
      _
    // Predicated region
    $region22: #{tpu_custom_call.1} parent=1 // pred_check
      _
    $region23: #{tpu_custom_call.1} parent=1 // pred_check_branch
      %143 = sbr.rel (0) target = $region25
    $region24: #{tpu_custom_call.1} parent=1 // pred_region
      %144 = dma.done [#allocation4], 128
    $region25: #{tpu_custom_call.1} parent=1 // pred_fallthru
      _
    %145 = vsyncpa [#allocation4], 1

// kernel: tpu_custom_call.1
$region0: #{tpu_custom_call.1}
  #allocation0 [shape = 'u32[]', space=smem, size = 0x4, offset = 0x4, fixed_abs, tag = 'smem constant byte address 0x4 - core index']
  #allocation1 [shape = 'u32[144,128]{1,0:T(1,128)}', space=vmem, size = 0x12000, scoped, tag = 'internal scratch']
  #allocation2 [shape = 'f32[8,16]{1,0:T(8,128)}', space=vmem, size = 0x1000, scoped, tag = 'scratch operand']
  %s0 = inlined_call_operand.vmem [shape: f32[8,256], index: 0, kind: input, shape index: {}]
  %s1 = inlined_call_operand.vmem [shape: f32[256,16], index: 1, kind: input, shape index: {}]
  %s2 = inlined_call_operand.hbm [shape: f32[8,16], index: 2, kind: output, shape index: {}]
  %s3 = sld [smem:[#allocation0]]
  $region26: #{tpu_custom_call.1} parent=0
    _
  %s5 = ssub.s32 1, %s3
  %s6 = scalar_select 0, %s5, %s3
  $region1: #{tpu_custom_call.1} parent=0
    #allocation3 [shape = 'u8[4096]{0}', space=vmem, size = 0x1000, scoped, tag = 'output window, operand 0, single buffered']
    #allocation4 [shape = 's32[1]{0}', space=sflag, size = 0x4, scoped, tag = 'scoped memory for tpu_custom_call.1']
    %7 = vsyncpa [#allocation4], 0
    // Predicated region
    $region2: #{tpu_custom_call.1} parent=1 // pred_check
      _
    $region3: #{tpu_custom_call.1} parent=1 // pred_check_branch
      %9 = sbr.rel (0) target = $region5
    $region4: #{tpu_custom_call.1} parent=1 // pred_region
      _
    $region5: #{tpu_custom_call.1} parent=1 // pred_fallthru
      _
    // Predicated region
    $region6: #{tpu_custom_call.1} parent=1 // pred_check
      _
    $region7: #{tpu_custom_call.1} parent=1 // pred_check_branch
      %11 = sbr.rel (0) target = $region9
    $region8: #{tpu_custom_call.1} parent=1 // pred_region
      _
    $region9: #{tpu_custom_call.1} parent=1 // pred_fallthru
      _
    %p12 = scmp.eq.s32.totalorder 0, 0
    // Predicated region
    $region10: #{tpu_custom_call.1} parent=1 // pred_check
      %p13 = pneg %p12
    $region11: #{tpu_custom_call.1} parent=1 // pred_check_branch
      %15 = sbr.rel (%p13) target = $region13
    $region12: #{tpu_custom_call.1} parent=1 // pred_region
      %vm16 = vcmask 130048
      %17 = vst.msk [vmem:[#allocation2] sm:$0xff] %vm16, 0.0
    $region13: #{tpu_custom_call.1} parent=1 // pred_fallthru
      _
    %v18 = vld [vmem:[#allocation2] sm:$0xff]
    %v19 = vld [vmem:[%s0] sm:$0xff]
    %v20 = vld [vmem:[%s0 + $0x8] sm:$0xff]
    %v21 = vld [vmem:[%s1] sm:$0xff]
    %v22 = vld [vmem:[%s1 + $0x8] sm:$0xff]
    %v23 = vld [vmem:[%s1 + $0x10] sm:$0xff]
    %v24 = vld [vmem:[%s1 + $0x18] sm:$0xff]
    %v25 = vld [vmem:[%s1 + $0x20] sm:$0xff]
    %v26 = vld [vmem:[%s1 + $0x28] sm:$0xff]
    %v27 = vld [vmem:[%s1 + $0x30] sm:$0xff]
    %v28 = vld [vmem:[%s1 + $0x38] sm:$0xff]
    %v29 = vld [vmem:[%s1 + $0x40] sm:$0xff]
    %v30 = vld [vmem:[%s1 + $0x48] sm:$0xff]
    %v31 = vld [vmem:[%s1 + $0x50] sm:$0xff]
    %v32 = vld [vmem:[%s1 + $0x58] sm:$0xff]
    %v33 = vld [vmem:[%s1 + $0x60] sm:$0xff]
    %v34 = vld [vmem:[%s1 + $0x68] sm:$0xff]
    %v35 = vld [vmem:[%s1 + $0x70] sm:$0xff]
    %v36 = vld [vmem:[%s1 + $0x78] sm:$0xff]
    %v37 = vld [vmem:[%s1 + $0x80] sm:$0xff]
    %v38 = vld [vmem:[%s1 + $0x88] sm:$0xff]
    %v39 = vld [vmem:[%s1 + $0x90] sm:$0xff]
    %v40 = vld [vmem:[%s1 + $0x98] sm:$0xff]
    %v41 = vld [vmem:[%s1 + $0xa0] sm:$0xff]
    %v42 = vld [vmem:[%s1 + $0xa8] sm:$0xff]
    %v43 = vld [vmem:[%s1 + $0xb0] sm:$0xff]
    %v44 = vld [vmem:[%s1 + $0xb8] sm:$0xff]
    %v45 = vld [vmem:[%s1 + $0xc0] sm:$0xff]
    %v46 = vld [vmem:[%s1 + $0xc8] sm:$0xff]
    %v47 = vld [vmem:[%s1 + $0xd0] sm:$0xff]
    %v48 = vld [vmem:[%s1 + $0xd8] sm:$0xff]
    %v49 = vld [vmem:[%s1 + $0xe0] sm:$0xff]
    %v50 = vld [vmem:[%s1 + $0xe8] sm:$0xff]
    %v51 = vld [vmem:[%s1 + $0xf0] sm:$0xff]
    %v52 = vld [vmem:[%s1 + $0xf8] sm:$0xff]
    %53 = vmatprep.subr.mxu0 0.0
    %54 = vmatpush1.msra.mxu0 %v21
    %55 = vmatprep.subr.mxu0 0.0
    %56 = vmatpush1.msra.mxu0 %v22
    %57 = vmatprep.subr.mxu0 0.0
    %58 = vmatpush1.msra.mxu0 %v23
    %59 = vmatprep.subr.mxu0 0.0
    %60 = vmatpush1.msra.mxu0 %v24
    %61 = vmatprep.subr.mxu0 0.0
    %62 = vmatpush1.msra.mxu0 %v25
    %63 = vmatprep.subr.mxu0 0.0
    %64 = vmatpush1.msra.mxu0 %v26
    %65 = vmatprep.subr.mxu0 0.0
    %66 = vmatpush1.msra.mxu0 %v27
    %67 = vmatprep.subr.mxu0 0.0
    %68 = vmatpush1.msra.mxu0 %v28
    %69 = vmatprep.subr.mxu0 0.0
    %70 = vmatpush1.msra.mxu0 %v29
    %71 = vmatprep.subr.mxu0 0.0
    %72 = vmatpush1.msra.mxu0 %v30
    %73 = vmatprep.subr.mxu0 0.0
    %74 = vmatpush1.msra.mxu0 %v31
    %75 = vmatprep.subr.mxu0 0.0
    %76 = vmatpush1.msra.mxu0 %v32
    %77 = vmatprep.subr.mxu0 0.0
    %78 = vmatpush1.msra.mxu0 %v33
    %79 = vmatprep.subr.mxu0 0.0
    %80 = vmatpush1.msra.mxu0 %v34
    %81 = vmatprep.subr.mxu0 0.0
    %82 = vmatpush1.msra.mxu0 %v35
    %83 = vmatprep.subr.mxu0 0.0
    %84 = vmatpush1.msra.mxu0 %v36
    %85 = vmatprep.subr.mxu0 0.0
    %86 = vmatpush1.msra.mxu0 %v37
    %87 = vmatprep.subr.mxu0 0.0
    %88 = vmatpush1.msra.mxu0 %v38
    %89 = vmatprep.subr.mxu0 0.0
    %90 = vmatpush1.msra.mxu0 %v39
    %91 = vmatprep.subr.mxu0 0.0
    %92 = vmatpush1.msra.mxu0 %v40
    %93 = vmatprep.subr.mxu0 0.0
    %94 = vmatpush1.msra.mxu0 %v41
    %95 = vmatprep.subr.mxu0 0.0
    %96 = vmatpush1.msra.mxu0 %v42
    %97 = vmatprep.subr.mxu0 0.0
    %98 = vmatpush1.msra.mxu0 %v43
    %99 = vmatprep.subr.mxu0 0.0
    %100 = vmatpush1.msra.mxu0 %v44
    %101 = vmatprep.subr.mxu0 0.0
    %102 = vmatpush1.msra.mxu0 %v45
    %103 = vmatprep.subr.mxu0 0.0
    %104 = vmatpush1.msra.mxu0 %v46
    %105 = vmatprep.subr.mxu0 0.0
    %106 = vmatpush1.msra.mxu0 %v47
    %107 = vmatprep.subr.mxu0 0.0
    %108 = vmatpush1.msra.mxu0 %v48
    %109 = vmatprep.subr.mxu0 0.0
    %110 = vmatpush1.msra.mxu0 %v49
    %111 = vmatprep.subr.mxu0 0.0
    %112 = vmatpush1.msra.mxu0 %v50
    %113 = vmatprep.subr.mxu0 0.0
    %114 = vmatpush1.msra.mxu0 %v51
    %115 = vmatprep.subr.mxu0 0.0
    %116 = vmatpush1.msra.mxu0 %v52
    %117 = vmatprep.mubr.f32.mxu0 %v20
    %118 = vmatmul.mubr.f32.gmra.mrb[0].mxu0 %v19
    %v119 = vpop.f32.mrb[0].mxu0
    %v120 = vadd.f32 0.0, %v119
    %v121 = vpop.f32.mrb[0].mxu0
    %122 = vdwg.mxu0
    %v123 = vadd.f32 %v18, %v120
    %vm124 = vcmask 130048
    %125 = vst.msk [vmem:[#allocation2] sm:$0xff] %vm124, %v123
    // Predicated region
    $region14: #{tpu_custom_call.1} parent=1 // pred_check
      %p126 = pneg %p12
    $region15: #{tpu_custom_call.1} parent=1 // pred_check_branch
      %128 = sbr.rel (%p126) target = $region17
    $region16: #{tpu_custom_call.1} parent=1 // pred_region
      %v129 = vld [vmem:[#allocation2] sm:$0xff]
      %v130 = vmul.f32 %v129, 0.0625
      %131 = vst.msk [vmem:[#allocation3] sm:$0xff] %vm124, %v130
    $region17: #{tpu_custom_call.1} parent=1 // pred_fallthru
      _
    // Predicated region
    $region18: #{tpu_custom_call.1} parent=1 // pred_check
      _
    $region19: #{tpu_custom_call.1} parent=1 // pred_check_branch
      %133 = sbr.rel (0) target = $region21
    $region20: #{tpu_custom_call.1} parent=1 // pred_region
      %s135 = ssub.s32 128, 128
      %136 = vsyncadd [#allocation4], %s135
      %s138 = sshll.u32 [#allocation3], 4
      %s139 = int_to_ptr.vmem [resolvable:$true] %s138
      %141 = dma.vmem_to_hbm [thread:$0]  %s139, 128, %s2, [#allocation4]
    $region21: #{tpu_custom_call.1} parent=1 // pred_fallthru
      _
    // Predicated region
    $region22: #{tpu_custom_call.1} parent=1 // pred_check
      _
    $region23: #{tpu_custom_call.1} parent=1 // pred_check_branch
      %143 = sbr.rel (0) target = $region25
    $region24: #{tpu_custom_call.1} parent=1 // pred_region
      %144 = dma.done [#allocation4], 128
    $region25: #{tpu_custom_call.1} parent=1 // pred_fallthru
      _
    %145 = vsyncpa [#allocation4], 1

</llo_original>
